<compile_context>
chip_gen: v7x
topology: tpu7x:2x2x1
jax: 0.10.0
libtpu: 0.0.40
codegen_flags: <defaults>
</compile_context>

<pallas_src>
import jax
import jax.numpy as jnp
from jax.experimental import pallas as pl
from jax.experimental.pallas import tpu as pltpu


def _linear_lrelu_kernel(x_ref, w_ref, b_ref, o_ref):
    # x_ref: (BB, T)  w_ref: (T, TN)  b_ref: (1, TN)  o_ref: (BB, TN)
    # HBM-bound kernel (K = num_traits is tiny); the MXU dot is cheap, so
    # accumulate in f32 regardless of the weight storage dtype.
    x = x_ref[...].astype(w_ref.dtype)
    acc = jnp.dot(x, w_ref[...], preferred_element_type=jnp.float32)
    acc = acc + b_ref[...].astype(jnp.float32)
    # LeakyReLU(0.01): max(y, 0.01*y) is identical for slope < 1, one fewer VPU op.
    o_ref[...] = jnp.maximum(acc, 0.01 * acc).astype(o_ref.dtype)


def prepare_trait_encoder_params(w, b, *, weight_dtype=jnp.bfloat16):
    """One-time parameter prep (do NOT call per forward).

    w: (target_size, num_traits)  -- PyTorch nn.Linear layout
    b: (target_size,)
    Returns:
      w_t: (num_traits, padded_n) in `weight_dtype`   (padded_n = target_size
           rounded up to a multiple of 128, zero padded -> lane-dense stores)
      b2:  (1, padded_n) float32
    """
    w = jnp.asarray(w)
    b = jnp.asarray(b, dtype=jnp.float32)
    target_size, _ = w.shape
    padded_n = ((target_size + 127) // 128) * 128
    pad = padded_n - target_size
    w_t = w.T.astype(weight_dtype)                      # (T, target_size)
    if pad:
        w_t = jnp.pad(w_t, ((0, 0), (0, pad)))
        b = jnp.pad(b, (0, pad))
    return w_t, b.reshape(1, -1)


def _pick_tile_n(total, want):
    """Largest 128-multiple divisor of `total` (itself a 128 multiple) <= want."""
    want = min(want, total)
    t = max((want // 128) * 128, 128)
    while t > 128 and total % t != 0:
        t -= 128
    return t


def _pick_tile_b(batch, want):
    """Largest 8-multiple divisor of `batch` that is <= want; else full batch."""
    if batch <= want:
        return batch
    t = (want // 8) * 8
    while t >= 8:
        if batch % t == 0:
            return t
        t -= 8
    return batch


def trait_encoder_forward(x, w_t, b2, *, target_channels, target_shape,
                          out_dtype=None, tile_n=8192, batch_block=512):
    """x: (B, num_traits); w_t: (num_traits, padded_n) [pre-transposed, padded];
    b2: (1, padded_n).  Returns (B, target_channels, target_shape, target_shape)
    in `out_dtype` (defaults to x.dtype; pass jnp.bfloat16 when the consumer
    accepts it -- this kernel is output-write bound)."""
    B, T = x.shape
    target_size = target_channels * target_shape * target_shape
    padded_n = w_t.shape[1]
    assert w_t.shape[0] == T, w_t.shape
    assert padded_n % 128 == 0 and padded_n >= target_size, padded_n
    assert b2.shape == (1, padded_n), b2.shape

    out_dtype = x.dtype if out_dtype is None else out_dtype

    tn = _pick_tile_n(padded_n, tile_n)
    bb = _pick_tile_b(B, batch_block)

    # v7x has 2 TensorCores: keep >= 2 grid points along a parallel axis when
    # possible instead of collapsing to a single mega-tile.
    if (padded_n // tn) == 1 and (B // bb) == 1 and (padded_n // 128) >= 2:
        tn = _pick_tile_n(padded_n, max(tn // 2, 128))

    # Batch innermost: W^T / bias block index is constant across the inner
    # loop, so their DMA is elided after the first step of each column tile.
    grid = (padded_n // tn, B // bb)

    itemsize = lambda dt: jnp.dtype(dt).itemsize
    # Double-buffered in/out footprint of one grid step ...
    step_in_out = (bb * T * itemsize(x.dtype)
                   + T * tn * itemsize(w_t.dtype)
                   + tn * itemsize(b2.dtype)
                   + bb * tn * itemsize(out_dtype))
    # ... plus the f32 matmul/elementwise intermediate (x2 covers the pre-cast
    # copy when out_dtype != f32), which BlockSpec buffering does not count.
    intermediate = 2 * bb * tn * 4
    try:
        vmem_cap = pltpu.get_tpu_info().vmem_capacity_bytes
    except Exception:
        vmem_cap = 64 << 20   # conservative: v7x per-TC VMEM
    cap = min((vmem_cap * 3) // 4, 96 << 20)   # ~48 MiB on v7x, ~96 MiB on v5e/v6e
    vmem_limit = min(max(2 * step_in_out + intermediate + (8 << 20), 32 << 20), cap)

    cost = pl.CostEstimate(
        flops=2 * B * T * padded_n + 2 * B * padded_n,   # matmul + bias/lrelu
        transcendentals=0,
        bytes_accessed=(B * T * itemsize(x.dtype)
                        + T * padded_n * itemsize(w_t.dtype)
                        + padded_n * itemsize(b2.dtype)
                        + B * padded_n * itemsize(out_dtype)),
    )

    out = pl.pallas_call(
        _linear_lrelu_kernel,
        out_shape=jax.ShapeDtypeStruct((B, padded_n), out_dtype),
        grid_spec=pltpu.PrefetchScalarGridSpec(
            num_scalar_prefetch=0,
            grid=grid,                                      # (N tiles, batch tiles)
            in_specs=[
                pl.BlockSpec((bb, T), lambda j, i: (i, 0)),    # x batch block
                pl.BlockSpec((T, tn), lambda j, i: (0, j)),    # W^T column tile
                pl.BlockSpec((1, tn), lambda j, i: (0, j)),    # bias tile
            ],
            out_specs=pl.BlockSpec((bb, tn), lambda j, i: (i, j)),
        ),
        compiler_params=pltpu.CompilerParams(
            dimension_semantics=("parallel", "parallel"),
            vmem_limit_bytes=vmem_limit,
        ),
        cost_estimate=cost,
    )(x, w_t, b2)

    if padded_n != target_size:
        out = out[:, :target_size]
    # Matches PyTorch .view(-1, C, H, W) on the row-major (B, target_size) result.
    return out.reshape(B, target_channels, target_shape, target_shape)


if __name__ == "__main__":
    # Small, shape-consistent configuration:
    #   num_traits=8, image_size=16, conv_dim=4
    #   -> target_channels = 16, target_shape = 4, target_size = 256
    num_traits = 8
    image_size = 16
    conv_dim = 4
    target_channels = conv_dim * 4
    target_shape = image_size // 4
    target_size = target_channels * target_shape * target_shape
    batch = 2

    key = jax.random.PRNGKey(0)
    kx, kw, kb = jax.random.split(key, 3)

    x = jax.random.normal(kx, (batch, num_traits), dtype=jnp.float32)
    # Deterministic synthetic parameters (PyTorch Linear weight shape: (out, in))
    w = jax.random.normal(kw, (target_size, num_traits), dtype=jnp.float32) * 0.05
    b = jax.random.normal(kb, (target_size,), dtype=jnp.float32) * 0.05

    # Reference in plain JAX (same math path, no Pallas)
    ref = x @ w.T + b
    ref = jnp.where(ref >= 0.0, ref, 0.01 * ref).reshape(
        batch, target_channels, target_shape, target_shape
    )

    # --- f32 weights + f32 output (exact parity check) ---
    w_t32, b2 = prepare_trait_encoder_params(w, b, weight_dtype=jnp.float32)
    y32 = trait_encoder_forward(
        x, w_t32, b2, target_channels=target_channels, target_shape=target_shape
    )
    y32 = jax.block_until_ready(y32)
    assert y32.shape == (batch, target_channels, target_shape, target_shape)
    assert jnp.allclose(y32, ref, atol=1e-5, rtol=1e-5)

    # --- bf16 weights + bf16 output (mem-bound production path; looser check) ---
    # Documented drift: bf16 storage deviates from the f32 PyTorch reference.
    w_tbf, b2bf = prepare_trait_encoder_params(w, b, weight_dtype=jnp.bfloat16)
    ybf = trait_encoder_forward(
        x, w_tbf, b2bf, target_channels=target_channels, target_shape=target_shape,
        out_dtype=jnp.bfloat16,
    )
    ybf = jax.block_until_ready(ybf)
    assert ybf.shape == (batch, target_channels, target_shape, target_shape)
    assert ybf.dtype == jnp.bfloat16
    assert jnp.allclose(ybf.astype(jnp.float32), ref, atol=2e-2, rtol=2e-2)

    # --- padding path: target_size not a multiple of 128 (conv_dim=1, image=8) ---
    tc2, ts2 = 4, 2                       # target_size = 16 -> padded to 128
    tsz2 = tc2 * ts2 * ts2
    kw2, kb2 = jax.random.split(kb)
    w2 = jax.random.normal(kw2, (tsz2, num_traits), dtype=jnp.float32) * 0.05
    bb2 = jax.random.normal(kb2, (tsz2,), dtype=jnp.float32) * 0.05
    ref2 = x @ w2.T + bb2
    ref2 = jnp.where(ref2 >= 0.0, ref2, 0.01 * ref2).reshape(batch, tc2, ts2, ts2)
    w2_t, b2_2 = prepare_trait_encoder_params(w2, bb2, weight_dtype=jnp.float32)
    y2 = trait_encoder_forward(x, w2_t, b2_2, target_channels=tc2, target_shape=ts2)
    y2 = jax.block_until_ready(y2)
    assert y2.shape == (batch, tc2, ts2, ts2)
    assert jnp.allclose(y2, ref2, atol=1e-5, rtol=1e-5)

    print("KERNEL_OK")
</pallas_src>

<mosaic_0001>
module attributes {stable_mosaic.version = 11 : i64} {
  func.func @_linear_lrelu_kernel(%arg0: i32, %arg1: i32, %arg2: memref<2x8xf32, #tpu.memory_space<vmem>>, %arg3: memref<8x128xf32, #tpu.memory_space<vmem>>, %arg4: memref<1x128xf32, #tpu.memory_space<vmem>>, %arg5: memref<2x128xf32, #tpu.memory_space<vmem>>) attributes {dimension_semantics = [#tpu.dimension_semantics<parallel>, #tpu.dimension_semantics<parallel>], iteration_bounds = array<i64: 2, 1>, scalar_prefetch = 0 : i64, scratch_operands = 0 : i64, tpu.core_type = #tpu.core_type<tc>, window_params = [{transform_indices = @transform_0, window_bounds = array<i64: 2, 8>}, {transform_indices = @transform_1, window_bounds = array<i64: 8, 128>}, {transform_indices = @transform_2, window_bounds = array<i64: 1, 128>}, {transform_indices = @transform_3, window_bounds = array<i64: 2, 128>}]} {
    %c0 = arith.constant 0 : index
    %c0_0 = arith.constant 0 : index
    %0 = vector.load %arg2[%c0, %c0_0] : memref<2x8xf32, #tpu.memory_space<vmem>>, vector<2x8xf32>
    %c0_1 = arith.constant 0 : index
    %c0_2 = arith.constant 0 : index
    %1 = vector.load %arg3[%c0_1, %c0_2] : memref<8x128xf32, #tpu.memory_space<vmem>>, vector<8x128xf32>
    %cst = arith.constant dense<0.000000e+00> : vector<2x128xf32>
    %2 = tpu.matmul %0, %1, %cst {dimension_numbers = #tpu.dot_dimension_numbers<[1], [0], [0], [1], [0, 0, 1, 1], [], []>} : vector<2x8xf32>, vector<8x128xf32>, vector<2x128xf32> -> vector<2x128xf32>
    %c0_3 = arith.constant 0 : index
    %c0_4 = arith.constant 0 : index
    %3 = vector.load %arg4[%c0_3, %c0_4] : memref<1x128xf32, #tpu.memory_space<vmem>>, vector<1x128xf32>
    %4 = vector.broadcast %3 : vector<1x128xf32> to vector<2x128xf32>
    %5 = arith.addf %2, %4 : vector<2x128xf32>
    %cst_5 = arith.constant 0.00999999977 : f32
    %6 = vector.broadcast %cst_5 : f32 to vector<2x128xf32>
    %7 = arith.mulf %6, %5 : vector<2x128xf32>
    %8 = arith.maximumf %5, %7 : vector<2x128xf32>
    %c0_6 = arith.constant 0 : index
    %c0_7 = arith.constant 0 : index
    %9 = vector.load %arg5[%c0_6, %c0_7] : memref<2x128xf32, #tpu.memory_space<vmem>>, vector<2x128xf32>
    tpu.vector_store %arg5[%c0_6, %c0_7], %8 {strides = array<i32>} : memref<2x128xf32, #tpu.memory_space<vmem>>, vector<2x128xf32>,
    return
  }
  func.func @transform_0(%arg0: i32, %arg1: i32) -> (i32, i32) {
    %c0_i32 = arith.constant 0 : i32
    %c0_i32_0 = arith.constant 0 : i32
    return %arg1, %c0_i32 : i32, i32
  }
  func.func @transform_1(%arg0: i32, %arg1: i32) -> (i32, i32) {
    %c0_i32 = arith.constant 0 : i32
    %c0_i32_0 = arith.constant 0 : i32
    return %c0_i32, %arg0 : i32, i32
  }
  func.func @transform_2(%arg0: i32, %arg1: i32) -> (i32, i32) {
    %c0_i32 = arith.constant 0 : i32
    %c0_i32_0 = arith.constant 0 : i32
    return %c0_i32, %arg0 : i32, i32
  }
  func.func @transform_3(%arg0: i32, %arg1: i32) -> (i32, i32) {
    %c0_i32 = arith.constant 0 : i32
    return %arg1, %arg0 : i32, i32
  }
}

</mosaic_0001>

<llo_original>
// kernel: tpu_custom_call.1
$region0: #{tpu_custom_call.1}
  #allocation0 [shape = 'u32[]', space=smem, size = 0x4, offset = 0x4, fixed_abs, tag = 'smem constant byte address 0x4 - core index']
  #allocation1 [shape = 'u32[144,128]{1,0:T(1,128)}', space=vmem, size = 0x12000, scoped, tag = 'internal scratch']
  %s0 = inlined_call_operand.hbm [shape: f32[2,8], index: 0, kind: input, shape index: {}]
  %s1 = inlined_call_operand.hbm [shape: f32[8,256], index: 1, kind: input, shape index: {}]
  %s2 = inlined_call_operand.vmem [shape: f32[1,256], index: 2, kind: input, shape index: {}]
  %s3 = inlined_call_operand.hbm [shape: f32[2,256], index: 3, kind: output, shape index: {}]
  %s4 = sld [smem:[#allocation0]]
  $region53: #{tpu_custom_call.1} parent=0
    _
  %s6 = ssub.s32 1, %s4
  %s7 = scalar_select 0, %s6, %s4
  $region1: #{tpu_custom_call.1} parent=0
    #allocation2 [shape = 'u8[1024]{0}', space=vmem, size = 0x400, scoped, tag = 'input window, operand 0, single buffered']
    #allocation3 [shape = 's32[2]{0}', space=sflag, size = 0x8, scoped, tag = 'scoped memory for tpu_custom_call.1']
    #allocation4 [shape = 's32[2]{0}', space=sflag, size = 0x8, scoped, tag = 'scoped memory for tpu_custom_call.1']
    #allocation5 [shape = 'u8[8192]{0}', space=vmem, size = 0x2000, scoped, tag = 'input window, operand 1']
    #allocation6 [shape = 's32[2]{0}', space=sflag, size = 0x8, scoped, tag = 'scoped memory for tpu_custom_call.1']
    #allocation7 [shape = 'u8[2048]{0}', space=vmem, size = 0x800, scoped, tag = 'output window, operand 0']
    %8 = vsyncpa [#allocation3], 0
    %9 = vsyncpa [#allocation6], 0
    %s10 = scalar_lea.sflag [#allocation6], 1
    %11 = vsyncpa %s10, 0
    %12 = vsyncpa [#allocation4], 0
    %s13 = scalar_lea.sflag [#allocation4], 1
    %14 = vsyncpa %s13, 0
    loop: start=0, step=1, limit=4
    $region2: #{tpu_custom_call.1} parent=1 // loop_pre_header
      _
    $region3: #{tpu_custom_call.1} parent=1 // loop_header
      %s16 = sphi 0, %s20
      %p17 = scmp.ge.s32.totalorder %s16, 4
      %s23 = sphi 0, %s35
      %s24 = sphi 0, %s31
      %s25 = sphi 0, %s23
      %s26 = sphi 0, %s24
      %s27 = sphi 0, %s25
      %s28 = sphi 0, %s26
      %s38 = sphi 0, %s40
      %s41 = sphi 0, %s38
      %s42 = sphi 0, %s41
      %s58 = sphi 0, %s42
      %s64 = sphi 0, %s66
      %s67 = sphi 0, %s64
      %s68 = sphi 0, %s67
      %s84 = sphi 0, %s68
      %s90 = sphi 0, %s92
      %s93 = sphi 0, %s90
      %s94 = sphi 0, %s93
      %s110 = sphi 0, %s94
      %s118 = sphi 0, %s120
      %s121 = sphi 0, %s118
      %s122 = sphi 0, %s121
      %s138 = sphi 0, %s122
    $region4: #{tpu_custom_call.1} parent=1 // loop_header_branch
      %19 = sbr.rel (%p17) target = $region8
    $region5: #{tpu_custom_call.1} parent=1 // loop_body
      %s21 = ssub.s32 %s16, 1
      %s22 = ssub.s32 %s16, 2
      %s29 = sadd.s32 1, %s24
      %p30 = scmp.ge.s32.totalorder %s29, 1
      %s31 = scalar_select %p30, 0, %s29
      %s32 = sadd.s32 1, %s23
      %s33 = scalar_select %p30, %s32, %s23
      %p34 = scmp.ge.s32.totalorder %s33, 2
      %s35 = scalar_select %p34, 0, %s33
      %s36 = ssub.s32 %s24, %s31
      %p37 = scmp.eq.s32.totalorder %s36, 0
      %s39 = sadd.s32 %s38, 1
      %s40 = scalar_select %p37, %s38, %s39
      %p43 = pneg %p37
      %p44 = scmp.eq.s32.totalorder %s16, 1
      %p45 = por %p43, %p44
      %p46 = scmp.ne.s32.totalorder %s38, %s41
      %p47 = scmp.eq.s32.totalorder %s16, 0
      %p48 = por %p46, %p47
      %p49 = scmp.ne.s32.totalorder %s38, %s41
      %p50 = scmp.eq.s32.totalorder %s21, 1
      %p51 = por %p49, %p50
      %p52 = scmp.ne.s32.totalorder %s41, %s42
      %p53 = scmp.eq.s32.totalorder %s21, 0
      %p54 = por %p52, %p53
      %p55 = scmp.ne.s32.totalorder %s41, %s42
      %p56 = scmp.eq.s32.totalorder %s22, 1
      %p57 = por %p55, %p56
      %p59 = scmp.ne.s32.totalorder %s42, %s58
      %p60 = scmp.eq.s32.totalorder %s22, 0
      %p61 = por %p59, %p60
      %s62 = ssub.s32 %s23, %s35
      %p63 = scmp.eq.s32.totalorder %s62, 0
      %s65 = sadd.s32 %s64, 1
      %s66 = scalar_select %p63, %s64, %s65
      %p69 = pneg %p63
      %p70 = scmp.eq.s32.totalorder %s16, 1
      %p71 = por %p69, %p70
      %p72 = scmp.ne.s32.totalorder %s64, %s67
      %p73 = scmp.eq.s32.totalorder %s16, 0
      %p74 = por %p72, %p73
      %p75 = scmp.ne.s32.totalorder %s64, %s67
      %p76 = scmp.eq.s32.totalorder %s21, 1
      %p77 = por %p75, %p76
      %p78 = scmp.ne.s32.totalorder %s67, %s68
      %p79 = scmp.eq.s32.totalorder %s21, 0
      %p80 = por %p78, %p79
      %p81 = scmp.ne.s32.totalorder %s67, %s68
      %p82 = scmp.eq.s32.totalorder %s22, 1
      %p83 = por %p81, %p82
      %p85 = scmp.ne.s32.totalorder %s68, %s84
      %p86 = scmp.eq.s32.totalorder %s22, 0
      %p87 = por %p85, %p86
      %s88 = ssub.s32 %s23, %s35
      %p89 = scmp.eq.s32.totalorder %s88, 0
      %s91 = sadd.s32 %s90, 1
      %s92 = scalar_select %p89, %s90, %s91
      %p95 = pneg %p89
      %p96 = scmp.eq.s32.totalorder %s16, 1
      %p97 = por %p95, %p96
      %p98 = scmp.ne.s32.totalorder %s90, %s93
      %p99 = scmp.eq.s32.totalorder %s16, 0
      %p100 = por %p98, %p99
      %p101 = scmp.ne.s32.totalorder %s90, %s93
      %p102 = scmp.eq.s32.totalorder %s21, 1
      %p103 = por %p101, %p102
      %p104 = scmp.ne.s32.totalorder %s93, %s94
      %p105 = scmp.eq.s32.totalorder %s21, 0
      %p106 = por %p104, %p105
      %p107 = scmp.ne.s32.totalorder %s93, %s94
      %p108 = scmp.eq.s32.totalorder %s22, 1
      %p109 = por %p107, %p108
      %p111 = scmp.ne.s32.totalorder %s94, %s110
      %p112 = scmp.eq.s32.totalorder %s22, 0
      %p113 = por %p111, %p112
      %s114 = ssub.s32 %s24, %s31
      %s115 = ssub.s32 %s23, %s35
      %s116 = sor.u32 %s114, %s115
      %p117 = scmp.eq.s32.totalorder %s116, 0
      %s119 = sadd.s32 %s118, 1
      %s120 = scalar_select %p117, %s118, %s119
      %p123 = pneg %p117
      %p124 = scmp.eq.s32.totalorder %s16, 1
      %p125 = por %p123, %p124
      %p126 = scmp.ne.s32.totalorder %s118, %s121
      %p127 = scmp.eq.s32.totalorder %s16, 0
      %p128 = por %p126, %p127
      %p129 = scmp.ne.s32.totalorder %s118, %s121
      %p130 = scmp.eq.s32.totalorder %s21, 1
      %p131 = por %p129, %p130
      %p132 = scmp.ne.s32.totalorder %s121, %s122
      %p133 = scmp.eq.s32.totalorder %s21, 0
      %p134 = por %p132, %p133
      %p135 = scmp.ne.s32.totalorder %s121, %s122
      %p136 = scmp.eq.s32.totalorder %s22, 1
      %p137 = por %p135, %p136
      %p139 = scmp.ne.s32.totalorder %s122, %s138
      %p140 = scmp.eq.s32.totalorder %s22, 0
      %p141 = por %p139, %p140
      %p142 = scmp.le.s32.totalorder 1, %s16
      %p143 = scmp.lt.s32.totalorder %s16, 3
      %p144 = pnand %p142, %p143
      %p145 = pneg %p144
      // Predicated region
      $region9: #{tpu_custom_call.1} parent=5 // pred_check
        _
      $region10: #{tpu_custom_call.1} parent=5 // pred_check_branch
        %147 = sbr.rel (%p144) target = $region12
      $region11: #{tpu_custom_call.1} parent=5 // pred_region
        %s148 = ssub.s32 %s16, 1
        // Predicated region
        $region13: #{tpu_custom_call.1} parent=11 // pred_check
          %p149 = pneg %p54
        $region14: #{tpu_custom_call.1} parent=11 // pred_check_branch
          %151 = sbr.rel (%p149) target = $region16
        $region15: #{tpu_custom_call.1} parent=11 // pred_region
          %s153 = ssub.s32 32, 32
          %154 = vsyncadd [#allocation3], %s153
          %s155 = smul.addr %s26, 32
          %s156 = scalar_lea.hbm %s0, %s155
          %s158 = sshll.u32 [#allocation2], 4
          %s159 = int_to_ptr.vmem [resolvable:$true] %s158
          %161 = dma.hbm_to_vmem [thread:$0]  %s156, 32, %s159, [#allocation3]
        $region16: #{tpu_custom_call.1} parent=11 // pred_fallthru
          _
      $region12: #{tpu_custom_call.1} parent=5 // pred_fallthru
        _
      %p162 = scmp.lt.s32.totalorder %s16, 2
      // Predicated region
      $region17: #{tpu_custom_call.1} parent=5 // pred_check
        %p163 = pneg %p162
      $region18: #{tpu_custom_call.1} parent=5 // pred_check_branch
        %165 = sbr.rel (%p163) target = $region20
      $region19: #{tpu_custom_call.1} parent=5 // pred_region
        // Predicated region
        $region21: #{tpu_custom_call.1} parent=19 // pred_check
          %p166 = pneg %p74
        $region22: #{tpu_custom_call.1} parent=19 // pred_check_branch
          %168 = sbr.rel (%p166) target = $region24
        $region23: #{tpu_custom_call.1} parent=19 // pred_region
          %s169 = sand.u32 %s64, 1
          %s170 = scalar_lea.sflag [#allocation6], %s169
          %s171 = sand.u32 %s64, 1
          %s172 = smul.addr %s171, 8
          %s173 = scalar_lea.vmem [#allocation5], %s172
          %s175 = ssub.s32 128, 128
          %176 = vsyncadd %s170, %s175
          %s177 = smul.addr %s23, 128
          %s178 = scalar_lea.hbm %s1, %s177
          %s180 = sshll.u32 %s173, 4
          %s181 = int_to_ptr.vmem [resolvable:$true] %s180
          %183 = dma.hbm_to_vmem [thread:$0]  %s178, 128, %s181, %s170
        $region24: #{tpu_custom_call.1} parent=19 // pred_fallthru
          _
        // Predicated region
        $region25: #{tpu_custom_call.1} parent=19 // pred_check
          %p184 = pneg %p100
        $region26: #{tpu_custom_call.1} parent=19 // pred_check_branch
          %186 = sbr.rel (%p184) target = $region28
        $region27: #{tpu_custom_call.1} parent=19 // pred_region
          %p187 = scmp.lt.s32.totalorder %s23, 1
          %s188 = scalar_select %p187, %s23, 1
          %s189 = scalar_lea.vmem %s2, %s188
        $region28: #{tpu_custom_call.1} parent=19 // pred_fallthru
          _
      $region20: #{tpu_custom_call.1} parent=5 // pred_fallthru
        _
      %p190 = scmp.le.s32.totalorder 1, %s16
      %p191 = scmp.lt.s32.totalorder %s16, 3
      %p192 = pnand %p190, %p191
      %p193 = pneg %p192
      // Predicated region
      $region29: #{tpu_custom_call.1} parent=5 // pred_check
        _
      $region30: #{tpu_custom_call.1} parent=5 // pred_check_branch
        %195 = sbr.rel (%p192) target = $region32
      $region31: #{tpu_custom_call.1} parent=5 // pred_region
        %s196 = ssub.s32 %s16, 1
        // Predicated region
        $region33: #{tpu_custom_call.1} parent=31 // pred_check
          %p197 = pneg %p54
        $region34: #{tpu_custom_call.1} parent=31 // pred_check_branch
          %199 = sbr.rel (%p197) target = $region36
        $region35: #{tpu_custom_call.1} parent=31 // pred_region
          %200 = dma.done [#allocation3], 32
        $region36: #{tpu_custom_call.1} parent=31 // pred_fallthru
          _
        %s201 = sand.u32 %s67, 1
        %s202 = scalar_lea.sflag [#allocation6], %s201
        %s203 = sand.u32 %s67, 1
        %s204 = smul.addr %s203, 8
        %s205 = scalar_lea.vmem [#allocation5], %s204
        // Predicated region
        $region37: #{tpu_custom_call.1} parent=31 // pred_check
          %p206 = pneg %p80
        $region38: #{tpu_custom_call.1} parent=31 // pred_check_branch
          %208 = sbr.rel (%p206) target = $region40
        $region39: #{tpu_custom_call.1} parent=31 // pred_region
          %209 = dma.done %s202, 128
        $region40: #{tpu_custom_call.1} parent=31 // pred_fallthru
          _
        %p210 = pneg %p54
        %p211 = pneg %p51
        %s212 = sand.u32 %s67, 1
        %s213 = scalar_lea.sflag [#allocation6], %s212
        %s214 = sand.u32 %s67, 1
        %s215 = smul.addr %s214, 8
        %s216 = scalar_lea.vmem [#allocation5], %s215
        %p217 = pneg %p80
        %p218 = pneg %p77
        %p219 = scmp.lt.s32.totalorder %s25, 1
        %s220 = scalar_select %p219, %s25, 1
        %s221 = scalar_lea.vmem %s2, %s220
        %p222 = pneg %p106
        %p223 = pneg %p103
        %p224 = pneg %p134
        %p225 = pneg %p131
        %s226 = sand.u32 %s121, 1
        %s227 = scalar_lea.sflag [#allocation4], %s226
        %s228 = sand.u32 %s121, 1
        %s229 = smul.addr %s228, 2
        %s230 = scalar_lea.vmem [#allocation7], %s229
        %p231 = scmp.lt.s32.totalorder %s25, 1
        %s232 = scalar_select %p231, %s25, 1
        %s233 = scalar_lea.vmem %s2, %s232
        %v234 = vld [vmem:[#allocation2] sm:$0x3]
        %v235 = vld [vmem:[%s205] sm:$0xff]
        %v236 = vld [vmem:[%s233] sm:$0x1]
        %v238 = vlaneseq
        %v239 = vshrl.u32 %v238, 7
        %v240 = vsub.s32 0, %v239
        %v241 = vrot.slane %v236, %v240
        %vm243 = vcmask 64512
        %v245 = vsel %vm243, %v234, 0
        %247 = vmatprep.subr.mxu0 0.0
        %248 = vmatpush1.msra.mxu0 %v235
        %249 = vmatprep.subr.mxu0 0.0
        %250 = vmatpush1.msra.mxu0 0.0
        %251 = vmatprep.subr.mxu0 0.0
        %252 = vmatpush1.msra.mxu0 0.0
        %253 = vmatprep.subr.mxu0 0.0
        %254 = vmatpush1.msra.mxu0 0.0
        %255 = vmatprep.subr.mxu0 0.0
        %256 = vmatpush1.msra.mxu0 0.0
        %257 = vmatprep.subr.mxu0 0.0
        %258 = vmatpush1.msra.mxu0 0.0
        %259 = vmatprep.subr.mxu0 0.0
        %260 = vmatpush1.msra.mxu0 0.0
        %261 = vmatprep.subr.mxu0 0.0
        %262 = vmatpush1.msra.mxu0 0.0
        %263 = vmatprep.subr.mxu0 0.0
        %264 = vmatpush1.msra.mxu0 0.0
        %265 = vmatprep.subr.mxu0 0.0
        %266 = vmatpush1.msra.mxu0 0.0
        %267 = vmatprep.subr.mxu0 0.0
        %268 = vmatpush1.msra.mxu0 0.0
        %269 = vmatprep.subr.mxu0 0.0
        %270 = vmatpush1.msra.mxu0 0.0
        %271 = vmatprep.subr.mxu0 0.0
        %272 = vmatpush1.msra.mxu0 0.0
        %273 = vmatprep.subr.mxu0 0.0
        %274 = vmatpush1.msra.mxu0 0.0
        %275 = vmatprep.subr.mxu0 0.0
        %276 = vmatpush1.msra.mxu0 0.0
        %277 = vmatprep.subr.mxu0 0.0
        %278 = vmatpush1.msra.mxu0 0.0
        %279 = vmatprep.subr.mxu0 0.0
        %280 = vmatpush1.msra.mxu0 0.0
        %281 = vmatprep.subr.mxu0 0.0
        %282 = vmatpush1.msra.mxu0 0.0
        %283 = vmatprep.subr.mxu0 0.0
        %284 = vmatpush1.msra.mxu0 0.0
        %285 = vmatprep.subr.mxu0 0.0
        %286 = vmatpush1.msra.mxu0 0.0
        %287 = vmatprep.subr.mxu0 0.0
        %288 = vmatpush1.msra.mxu0 0.0
        %289 = vmatprep.subr.mxu0 0.0
        %290 = vmatpush1.msra.mxu0 0.0
        %291 = vmatprep.subr.mxu0 0.0
        %292 = vmatpush1.msra.mxu0 0.0
        %293 = vmatprep.subr.mxu0 0.0
        %294 = vmatpush1.msra.mxu0 0.0
        %295 = vmatprep.subr.mxu0 0.0
        %296 = vmatpush1.msra.mxu0 0.0
        %297 = vmatprep.subr.mxu0 0.0
        %298 = vmatpush1.msra.mxu0 0.0
        %299 = vmatprep.subr.mxu0 0.0
        %300 = vmatpush1.msra.mxu0 0.0
        %301 = vmatprep.subr.mxu0 0.0
        %302 = vmatpush1.msra.mxu0 0.0
        %303 = vmatprep.subr.mxu0 0.0
        %304 = vmatpush1.msra.mxu0 0.0
        %305 = vmatprep.subr.mxu0 0.0
        %306 = vmatpush1.msra.mxu0 0.0
        %307 = vmatprep.subr.mxu0 0.0
        %308 = vmatpush1.msra.mxu0 0.0
        %309 = vmatprep.subr.mxu0 0.0
        %310 = vmatpush1.msra.mxu0 0.0
        %311 = vmatprep.mubr.f32.mxu0 0.0
        %312 = vmatmul.mubr.f32.gmra.mrb[0].mxu0 %v245
        %v313 = vpop.f32.mrb[0].mxu0
        %v314 = vadd.f32 %v241, %v313
        %v315 = vpop.f32.mrb[0].mxu0
        %316 = vdwg.mxu0
        %v317 = vmul.f32 %v314, 0.01
        %v318 = vmax.f32 %v314, %v317
        %319 = vst [vmem:[%s230] sm:$0x3] %v318
        %s320 = sand.u32 %s121, 1
        %s321 = scalar_lea.sflag [#allocation4], %s320
        %s322 = sand.u32 %s121, 1
        %s323 = smul.addr %s322, 2
        %s324 = scalar_lea.vmem [#allocation7], %s323
        // Predicated region
        $region41: #{tpu_custom_call.1} parent=31 // pred_check
          %p325 = pneg %p131
        $region42: #{tpu_custom_call.1} parent=31 // pred_check_branch
          %327 = sbr.rel (%p325) target = $region44
        $region43: #{tpu_custom_call.1} parent=31 // pred_region
          %s329 = ssub.s32 32, 32
          %330 = vsyncadd %s321, %s329
          %s331 = smul.addr %s26, 2
          %s332 = sadd.s32 %s25, %s331
          %s333 = smul.addr %s332, 32
          %s334 = scalar_lea.hbm %s3, %s333
          %s336 = sshll.u32 %s324, 4
          %s337 = int_to_ptr.vmem [resolvable:$true] %s336
          %339 = dma.vmem_to_hbm [thread:$0]  %s337, 32, %s334, %s321
        $region44: #{tpu_custom_call.1} parent=31 // pred_fallthru
          _
      $region32: #{tpu_custom_call.1} parent=5 // pred_fallthru
        _
      %p340 = scmp.le.s32.totalorder 2, %s16
      // Predicated region
      $region45: #{tpu_custom_call.1} parent=5 // pred_check
        %p341 = pneg %p340
      $region46: #{tpu_custom_call.1} parent=5 // pred_check_branch
        %343 = sbr.rel (%p341) target = $region48
      $region47: #{tpu_custom_call.1} parent=5 // pred_region
        %s344 = ssub.s32 %s16, 2
        // Predicated region
        $region49: #{tpu_custom_call.1} parent=47 // pred_check
          %p345 = pneg %p137
        $region50: #{tpu_custom_call.1} parent=47 // pred_check_branch
          %347 = sbr.rel (%p345) target = $region52
        $region51: #{tpu_custom_call.1} parent=47 // pred_region
          %s348 = sand.u32 %s122, 1
          %s349 = scalar_lea.sflag [#allocation4], %s348
          %s350 = sand.u32 %s122, 1
          %s351 = smul.addr %s350, 2
          %s352 = scalar_lea.vmem [#allocation7], %s351
          %353 = dma.done %s349, 32
        $region52: #{tpu_custom_call.1} parent=47 // pred_fallthru
          _
      $region48: #{tpu_custom_call.1} parent=5 // pred_fallthru
        _
    $region6: #{tpu_custom_call.1} parent=1 // loop_footer
      %s20 = sadd.s32 1, %s16
    $region7: #{tpu_custom_call.1} parent=1 // loop_footer_branch
      %15 = sbr.rel target = $region3
    $region8: #{tpu_custom_call.1} parent=1 // loop_exit
      _
    %354 = vsyncpa [#allocation3], 1
    %s355 = scalar_lea.sflag [#allocation3], 1
    %356 = vsyncpa %s355, 1
    %357 = vsyncpa [#allocation6], 1
    %s358 = scalar_lea.sflag [#allocation6], 1
    %359 = vsyncpa %s358, 1
    %360 = vsyncpa [#allocation4], 1
    %s361 = scalar_lea.sflag [#allocation4], 1
    %362 = vsyncpa %s361, 1

</llo_original>
